<compile_context>
chip_gen: v7x
topology: tpu7x:2x2x1
jax: 0.10.0
libtpu: 0.0.40
codegen_flags: <defaults>
</compile_context>

<pallas_src>
import math

import jax
import jax.numpy as jnp
from jax.experimental import pallas as pl
from jax.experimental.pallas import tpu as pltpu


# ---------------------------------------------------------------------------
# Kernel
# ---------------------------------------------------------------------------
def dqnet_sparse_kernel(in_ref, wlin_ref, w1c_ref, b1_ref,
                        wh_ref, bh_ref, wend_ref, bend_ref, out_ref):
    f32 = jnp.float32
    md = w1c_ref.dtype                      # matmul operand dtype (bf16 default)

    xin = in_ref[...]                       # (T, dim_cat) f32 activations

    # --- parametric linear branch (exact f32): (1,Dc) x (T,Dc)^T -> (1,T) ---
    out_row = jax.lax.dot_general(
        wlin_ref[...], xin, (((1,), (1,)), ((), ())),
        preferred_element_type=f32)

    # --- non-parametric branch -------------------------------------------
    # First layer: weight rows for the lin features are zero, so this equals
    # ReLU(in_nonpar @ W1.T + b1).
    x = jnp.dot(xin.astype(md), w1c_ref[...], preferred_element_type=f32)
    x = jnp.maximum(x + b1_ref[...], 0.0)
    # nn.Dropout(p=1e-5): identity under inference semantics.

    # Hidden sparse layers (masks already folded into wh_ref); static unroll.
    for l in range(wh_ref.shape[0]):
        x = jnp.dot(x.astype(md), wh_ref[l], preferred_element_type=f32)
        x = jnp.maximum(x + bh_ref[l], 0.0)
        # dropout -> identity

    # Final width->1 layer as a lane-dense MXU pass: (1,W) x (T,W)^T -> (1,T).
    out_row = out_row + jax.lax.dot_general(
        wend_ref[...], x.astype(md), (((1,), (1,)), ((), ())),
        preferred_element_type=f32)

    out_ref[...] = (out_row + bend_ref[0]).astype(out_ref.dtype)


# ---------------------------------------------------------------------------
# One-time parameter preparation (done once, NOT per forward call)
# ---------------------------------------------------------------------------
def prepare_params(params, matmul_dtype=jnp.bfloat16):
    """Fold masks into weights, build concatenated-input weights, cast MXU
    operands.  The linLinear row stays f32 so that branch remains exact."""
    (w_lin, w1, b1, wh, bh, masks, wend, bend) = params
    num_layers, width, _ = wh.shape
    dim_lin = w_lin.shape[1]
    dim_nonpar = w1.shape[1]

    # linLinear weight over the concatenated input, zero over nonpar features.
    wlin_row = jnp.concatenate(
        [w_lin.astype(jnp.float32),
         jnp.zeros((1, dim_nonpar), jnp.float32)], axis=1)          # (1, Dc) f32

    # nonparLinear1 weight over the concatenated input, (in, out) layout,
    # zero over the lin features.
    w1c = jnp.concatenate(
        [jnp.zeros((dim_lin, width), jnp.float32),
         w1.T.astype(jnp.float32)], axis=0).astype(matmul_dtype)    # (Dc, W)

    b1_2d = b1.reshape(1, width).astype(jnp.float32)                # (1, W)
    wh_masked_t = jnp.transpose(wh * masks, (0, 2, 1)).astype(matmul_dtype)  # (L,W,W)
    bh_3d = bh.reshape(num_layers, 1, width).astype(jnp.float32)    # (L, 1, W)
    wend_row = wend.reshape(1, width).astype(matmul_dtype)          # (1, W)
    bend_1d = bend.reshape(1).astype(jnp.float32)                   # (1,) SMEM
    return (wlin_row, w1c, b1_2d, wh_masked_t, bh_3d, wend_row, bend_1d)


def _pick_tile_n(n, max_tile=2048):
    """Row-tile: multiple of 128, capped at max_tile, and >= 2 grid steps for
    medium/large batches (keeps both v7x TensorCores busy)."""
    half = (n + 1) // 2
    half_up = ((half + 127) // 128) * 128
    return max(128, min(max_tile, half_up))


# ---------------------------------------------------------------------------
# Forward wrapper
# ---------------------------------------------------------------------------
def dqnet_sparse_forward(in_lin, in_nonpar, prepared):
    (wlin_row, w1c, b1_2d, wh_t, bh_3d, wend_row, bend_1d) = prepared
    n = in_lin.shape[0]
    dim_cat = wlin_row.shape[1]
    num_layers, width, _ = wh_t.shape

    tile_n = _pick_tile_n(n)
    num_tiles = pl.cdiv(n, tile_n)
    n_pad = num_tiles * tile_n

    # Merge the two narrow activation streams; zero-pad ragged batches to a
    # tile multiple (layout plumbing, done once per call in the wrapper).
    in_cat = jnp.concatenate([in_lin, in_nonpar], axis=1).astype(jnp.float32)
    if n_pad != n:
        in_cat = jnp.pad(in_cat, ((0, n_pad - n), (0, 0)))

    in_specs = [
        # activation tiles: stepped along the batch grid (auto double-buffered)
        pl.BlockSpec((tile_n, dim_cat), lambda i: (i, 0)),
        # weights: broadcast index_maps -> stay VMEM-resident across grid steps
        pl.BlockSpec((1, dim_cat), lambda i: (0, 0)),
        pl.BlockSpec((dim_cat, width), lambda i: (0, 0)),
        pl.BlockSpec((1, width), lambda i: (0, 0)),
        pl.BlockSpec((num_layers, width, width), lambda i: (0, 0, 0)),
        pl.BlockSpec((num_layers, 1, width), lambda i: (0, 0, 0)),
        pl.BlockSpec((1, width), lambda i: (0, 0)),
        # scalar end-bias lives in SMEM
        pl.BlockSpec(memory_space=pltpu.MemorySpace.SMEM),
    ]
    # lane-dense (1, tile_n) output blocks along the minor axis
    out_specs = pl.BlockSpec((1, tile_n), lambda i: (0, i))

    flops = 2 * n_pad * (dim_cat * (width + 1)
                         + num_layers * width * width + width)
    bytes_accessed = (n_pad * dim_cat * 4 + n_pad * 4
                      + sum(int(a.size) * jnp.dtype(a.dtype).itemsize
                            for a in prepared))
    cost = pl.CostEstimate(flops=int(flops), transcendentals=0,
                           bytes_accessed=int(bytes_accessed))

    out_row = pl.pallas_call(
        dqnet_sparse_kernel,
        out_shape=jax.ShapeDtypeStruct((1, n_pad), jnp.float32),
        grid=(num_tiles,),
        in_specs=in_specs,
        out_specs=out_specs,
        cost_estimate=cost,
        compiler_params=pltpu.CompilerParams(
            dimension_semantics=("parallel",),
            vmem_limit_bytes=32 * 1024 * 1024),
    )(in_cat, wlin_row, w1c, b1_2d, wh_t, bh_3d, wend_row, bend_1d)

    return out_row.reshape(n_pad)[:n].reshape(n, 1)


# ---------------------------------------------------------------------------
# Synthetic params + pure-JAX reference
# ---------------------------------------------------------------------------
def init_params(key, dim_lin, dim_nonpar, width, num_hid_layer, sparse_ratio=0.5):
    """Deterministic synthetic parameter init mirroring the module's shapes."""
    keys = jax.random.split(key, 8)

    # linLinear: weight copied from coef_init_weight, shape (1, dim_lin), no bias
    coef_init_weight = jnp.linspace(-0.5, 0.5, dim_lin,
                                    dtype=jnp.float32).reshape(1, dim_lin)
    w_lin = coef_init_weight

    # nonparLinear1: nn.Linear default init U(-1/sqrt(in), 1/sqrt(in))
    s1 = 1.0 / math.sqrt(dim_nonpar)
    w1 = jax.random.uniform(keys[0], (width, dim_nonpar), jnp.float32, -s1, s1)
    b1 = jax.random.uniform(keys[1], (width,), jnp.float32, -s1, s1)

    # CustomizedLinear hidden layers: U(-1/sqrt(width), 1/sqrt(width)), 0/1 masks
    sh = 1.0 / math.sqrt(width)
    wh = jax.random.uniform(keys[2], (num_hid_layer, width, width),
                            jnp.float32, -sh, sh)
    bh = jax.random.uniform(keys[3], (num_hid_layer, width), jnp.float32, -sh, sh)
    masks = jax.random.bernoulli(keys[4], 1.0 - sparse_ratio,
                                 (num_hid_layer, width, width)).astype(jnp.float32)

    # nonparLinearEnd: nn.Linear(width, 1)
    se = 1.0 / math.sqrt(width)
    wend = jax.random.uniform(keys[5], (1, width), jnp.float32, -se, se)
    bend = jax.random.uniform(keys[6], (1,), jnp.float32, -se, se)

    return (w_lin, w1, b1, wh, bh, masks, wend, bend)


def reference_forward(in_lin, in_nonpar, params):
    """Pure-JAX reference matching the PyTorch forward (dropout = identity)."""
    (w_lin, w1, b1, wh, bh, masks, wend, bend) = params
    out_lin = jnp.sum(in_lin * w_lin[0], axis=-1, keepdims=True)
    x = jnp.maximum(in_nonpar @ w1.T + b1, 0.0)
    for l in range(wh.shape[0]):
        x = jnp.maximum(x @ (wh[l] * masks[l]).T + bh[l], 0.0)
    out_nonpar = jnp.sum(x * wend[0], axis=-1, keepdims=True) + bend
    return out_nonpar + out_lin


# ---------------------------------------------------------------------------
if __name__ == "__main__":
    # small shapes consistent with the module's forward
    N = 8            # batch
    DIM_LIN = 8      # dim_lin
    DIM_NONPAR = 16  # dim_nonpar
    WIDTH = 128      # nodes[1]
    NUM_HID = 2      # nodes[0]

    key = jax.random.PRNGKey(0)
    k_in_lin, k_in_np, k_params, k_big = jax.random.split(key, 4)

    in_lin = jax.random.normal(k_in_lin, (N, DIM_LIN), jnp.float32)
    in_nonpar = jax.random.normal(k_in_np, (N, DIM_NONPAR), jnp.float32)

    params = init_params(k_params, DIM_LIN, DIM_NONPAR, WIDTH, NUM_HID,
                         sparse_ratio=0.5)

    # one-time weight prep (mask folding, concat/zero-pad, casts)
    prep_f32 = prepare_params(params, jnp.float32)
    prep_bf16 = prepare_params(params)          # default: bf16 matmul operands

    fwd = jax.jit(dqnet_sparse_forward)

    # f32 path, small batch (single 128-row padded block)
    out = jax.block_until_ready(fwd(in_lin, in_nonpar, prep_f32))
    ref = reference_forward(in_lin, in_nonpar, params)
    assert out.shape == (N, 1)
    assert jnp.allclose(out, ref, atol=1e-3, rtol=1e-3), \
        "f32 kernel mismatch (small batch)"

    # f32 path, ragged larger batch exercising padding + the 2-step parallel grid
    N_BIG = 1000
    kb1, kb2 = jax.random.split(k_big)
    in_lin_b = jax.random.normal(kb1, (N_BIG, DIM_LIN), jnp.float32)
    in_np_b = jax.random.normal(kb2, (N_BIG, DIM_NONPAR), jnp.float32)
    out_b = jax.block_until_ready(fwd(in_lin_b, in_np_b, prep_f32))
    ref_b = reference_forward(in_lin_b, in_np_b, params)
    assert out_b.shape == (N_BIG, 1)
    assert jnp.allclose(out_b, ref_b, atol=1e-3, rtol=1e-3), \
        "f32 kernel mismatch (ragged tiled batch)"

    # default bf16 MXU-operand path (biases / elementwise stay f32): looser tol
    out_bf16 = jax.block_until_ready(fwd(in_lin_b, in_np_b, prep_bf16))
    assert jnp.allclose(out_bf16, ref_b, atol=5e-2, rtol=5e-2), \
        "bf16 kernel mismatch"

    print("KERNEL_OK")
</pallas_src>

<mosaic_0001>
module attributes {stable_mosaic.version = 11 : i64} {
  func.func @dqnet_sparse_kernel(%arg0: i32, %arg1: memref<128x24xf32, #tpu.memory_space<vmem>>, %arg2: memref<1x24xf32, #tpu.memory_space<vmem>>, %arg3: memref<24x128xf32, #tpu.memory_space<vmem>>, %arg4: memref<1x128xf32, #tpu.memory_space<vmem>>, %arg5: memref<2x128x128xf32, #tpu.memory_space<vmem>>, %arg6: memref<2x1x128xf32, #tpu.memory_space<vmem>>, %arg7: memref<1x128xf32, #tpu.memory_space<vmem>>, %arg8: memref<1xf32, #tpu.memory_space<smem>>, %arg9: memref<1x128xf32, #tpu.memory_space<vmem>>) attributes {dimension_semantics = [#tpu.dimension_semantics<parallel>], iteration_bounds = array<i64: 1>, scalar_prefetch = 0 : i64, scratch_operands = 0 : i64, tpu.core_type = #tpu.core_type<tc>, window_params = [{transform_indices = @transform_0, window_bounds = array<i64: 128, 24>}, {pipeline_mode = #tpu.pipeline_mode<synchronous>, transform_indices = @transform_1, window_bounds = array<i64: 1, 24>}, {pipeline_mode = #tpu.pipeline_mode<synchronous>, transform_indices = @transform_2, window_bounds = array<i64: 24, 128>}, {pipeline_mode = #tpu.pipeline_mode<synchronous>, transform_indices = @transform_3, window_bounds = array<i64: 1, 128>}, {pipeline_mode = #tpu.pipeline_mode<synchronous>, transform_indices = @transform_4, window_bounds = array<i64: 2, 128, 128>}, {pipeline_mode = #tpu.pipeline_mode<synchronous>, transform_indices = @transform_5, window_bounds = array<i64: 2, 1, 128>}, {pipeline_mode = #tpu.pipeline_mode<synchronous>, transform_indices = @transform_6, window_bounds = array<i64: 1, 128>}, {transform_indices = @transform_7, window_bounds = array<i64: 1>}, {transform_indices = @transform_8, window_bounds = array<i64: 1, 128>}]} {
    %c0 = arith.constant 0 : index
    %c0_0 = arith.constant 0 : index
    %0 = vector.load %arg1[%c0, %c0_0] : memref<128x24xf32, #tpu.memory_space<vmem>>, vector<128x24xf32>
    %c0_1 = arith.constant 0 : index
    %c0_2 = arith.constant 0 : index
    %1 = vector.load %arg2[%c0_1, %c0_2] : memref<1x24xf32, #tpu.memory_space<vmem>>, vector<1x24xf32>
    %cst = arith.constant dense<0.000000e+00> : vector<1x128xf32>
    %2 = tpu.matmul %1, %0, %cst {dimension_numbers = #tpu.dot_dimension_numbers<[1], [1], [0], [0], [0, 0, 1, 0], [], []>} : vector<1x24xf32>, vector<128x24xf32>, vector<1x128xf32> -> vector<1x128xf32>
    %c0_3 = arith.constant 0 : index
    %c0_4 = arith.constant 0 : index
    %3 = vector.load %arg3[%c0_3, %c0_4] : memref<24x128xf32, #tpu.memory_space<vmem>>, vector<24x128xf32>
    %cst_5 = arith.constant dense<0.000000e+00> : vector<128x128xf32>
    %4 = tpu.matmul %0, %3, %cst_5 {dimension_numbers = #tpu.dot_dimension_numbers<[1], [0], [0], [1], [0, 0, 1, 1], [], []>} : vector<128x24xf32>, vector<24x128xf32>, vector<128x128xf32> -> vector<128x128xf32>
    %c0_6 = arith.constant 0 : index
    %c0_7 = arith.constant 0 : index
    %5 = vector.load %arg4[%c0_6, %c0_7] : memref<1x128xf32, #tpu.memory_space<vmem>>, vector<1x128xf32>
    %6 = vector.broadcast %5 : vector<1x128xf32> to vector<128x128xf32>
    %7 = arith.addf %4, %6 : vector<128x128xf32>
    %cst_8 = arith.constant 0.000000e+00 : f32
    %8 = vector.broadcast %cst_8 : f32 to vector<128x128xf32>
    %9 = arith.maximumf %7, %8 : vector<128x128xf32>
    %c0_9 = arith.constant 0 : index
    %c0_10 = arith.constant 0 : index
    %c0_11 = arith.constant 0 : index
    %10 = vector.load %arg5[%c0_9, %c0_10, %c0_11] : memref<2x128x128xf32, #tpu.memory_space<vmem>>, vector<1x128x128xf32>
    %11 = vector.shape_cast %10 : vector<1x128x128xf32> to vector<128x128xf32>
    %cst_12 = arith.constant dense<0.000000e+00> : vector<128x128xf32>
    %12 = tpu.matmul %9, %11, %cst_12 {dimension_numbers = #tpu.dot_dimension_numbers<[1], [0], [0], [1], [0, 0, 1, 1], [], []>} : vector<128x128xf32>, vector<128x128xf32>, vector<128x128xf32> -> vector<128x128xf32>
    %c0_13 = arith.constant 0 : index
    %c0_14 = arith.constant 0 : index
    %c0_15 = arith.constant 0 : index
    %13 = vector.load %arg6[%c0_13, %c0_14, %c0_15] : memref<2x1x128xf32, #tpu.memory_space<vmem>>, vector<1x1x128xf32>
    %14 = vector.shape_cast %13 : vector<1x1x128xf32> to vector<1x128xf32>
    %15 = vector.broadcast %14 : vector<1x128xf32> to vector<128x128xf32>
    %16 = arith.addf %12, %15 : vector<128x128xf32>
    %cst_16 = arith.constant 0.000000e+00 : f32
    %17 = vector.broadcast %cst_16 : f32 to vector<128x128xf32>
    %18 = arith.maximumf %16, %17 : vector<128x128xf32>
    %c1 = arith.constant 1 : index
    %c0_17 = arith.constant 0 : index
    %c0_18 = arith.constant 0 : index
    %19 = vector.load %arg5[%c1, %c0_17, %c0_18] : memref<2x128x128xf32, #tpu.memory_space<vmem>>, vector<1x128x128xf32>
    %20 = vector.shape_cast %19 : vector<1x128x128xf32> to vector<128x128xf32>
    %cst_19 = arith.constant dense<0.000000e+00> : vector<128x128xf32>
    %21 = tpu.matmul %18, %20, %cst_19 {dimension_numbers = #tpu.dot_dimension_numbers<[1], [0], [0], [1], [0, 0, 1, 1], [], []>} : vector<128x128xf32>, vector<128x128xf32>, vector<128x128xf32> -> vector<128x128xf32>
    %c1_20 = arith.constant 1 : index
    %c0_21 = arith.constant 0 : index
    %c0_22 = arith.constant 0 : index
    %22 = vector.load %arg6[%c1_20, %c0_21, %c0_22] : memref<2x1x128xf32, #tpu.memory_space<vmem>>, vector<1x1x128xf32>
    %23 = vector.shape_cast %22 : vector<1x1x128xf32> to vector<1x128xf32>
    %24 = vector.broadcast %23 : vector<1x128xf32> to vector<128x128xf32>
    %25 = arith.addf %21, %24 : vector<128x128xf32>
    %cst_23 = arith.constant 0.000000e+00 : f32
    %26 = vector.broadcast %cst_23 : f32 to vector<128x128xf32>
    %27 = arith.maximumf %25, %26 : vector<128x128xf32>
    %c0_24 = arith.constant 0 : index
    %c0_25 = arith.constant 0 : index
    %28 = vector.load %arg7[%c0_24, %c0_25] : memref<1x128xf32, #tpu.memory_space<vmem>>, vector<1x128xf32>
    %cst_26 = arith.constant dense<0.000000e+00> : vector<1x128xf32>
    %29 = tpu.matmul %28, %27, %cst_26 {dimension_numbers = #tpu.dot_dimension_numbers<[1], [1], [0], [0], [0, 0, 1, 0], [], []>} : vector<1x128xf32>, vector<128x128xf32>, vector<1x128xf32> -> vector<1x128xf32>
    %30 = arith.addf %2, %29 : vector<1x128xf32>
    %c0_27 = arith.constant 0 : index
    %31 = memref.load %arg8[%c0_27] : memref<1xf32, #tpu.memory_space<smem>>
    %32 = vector.broadcast %31 : f32 to vector<1x128xf32>
    %33 = arith.addf %30, %32 : vector<1x128xf32>
    %c0_28 = arith.constant 0 : index
    %c0_29 = arith.constant 0 : index
    %34 = vector.load %arg9[%c0_28, %c0_29] : memref<1x128xf32, #tpu.memory_space<vmem>>, vector<1x128xf32>
    tpu.vector_store %arg9[%c0_28, %c0_29], %33 {strides = array<i32>} : memref<1x128xf32, #tpu.memory_space<vmem>>, vector<1x128xf32>,
    return
  }
  func.func @transform_0(%arg0: i32) -> (i32, i32) {
    %c0_i32 = arith.constant 0 : i32
    %c0_i32_0 = arith.constant 0 : i32
    return %arg0, %c0_i32 : i32, i32
  }
  func.func @transform_1(%arg0: i32) -> (i32, i32) {
    %c0_i32 = arith.constant 0 : i32
    %c0_i32_0 = arith.constant 0 : i32
    %c0_i32_1 = arith.constant 0 : i32
    return %c0_i32, %c0_i32_0 : i32, i32
  }
  func.func @transform_2(%arg0: i32) -> (i32, i32) {
    %c0_i32 = arith.constant 0 : i32
    %c0_i32_0 = arith.constant 0 : i32
    %c0_i32_1 = arith.constant 0 : i32
    return %c0_i32, %c0_i32_0 : i32, i32
  }
  func.func @transform_3(%arg0: i32) -> (i32, i32) {
    %c0_i32 = arith.constant 0 : i32
    %c0_i32_0 = arith.constant 0 : i32
    %c0_i32_1 = arith.constant 0 : i32
    return %c0_i32, %c0_i32_0 : i32, i32
  }
  func.func @transform_4(%arg0: i32) -> (i32, i32, i32) {
    %c0_i32 = arith.constant 0 : i32
    %c0_i32_0 = arith.constant 0 : i32
    %c0_i32_1 = arith.constant 0 : i32
    %c0_i32_2 = arith.constant 0 : i32
    return %c0_i32, %c0_i32_0, %c0_i32_1 : i32, i32, i32
  }
  func.func @transform_5(%arg0: i32) -> (i32, i32, i32) {
    %c0_i32 = arith.constant 0 : i32
    %c0_i32_0 = arith.constant 0 : i32
    %c0_i32_1 = arith.constant 0 : i32
    %c0_i32_2 = arith.constant 0 : i32
    return %c0_i32, %c0_i32_0, %c0_i32_1 : i32, i32, i32
  }
  func.func @transform_6(%arg0: i32) -> (i32, i32) {
    %c0_i32 = arith.constant 0 : i32
    %c0_i32_0 = arith.constant 0 : i32
    %c0_i32_1 = arith.constant 0 : i32
    return %c0_i32, %c0_i32_0 : i32, i32
  }
  func.func @transform_7(%arg0: i32) -> i32 {
    %c0_i32 = arith.constant 0 : i32
    %c0_i32_0 = arith.constant 0 : i32
    return %c0_i32 : i32
  }
  func.func @transform_8(%arg0: i32) -> (i32, i32) {
    %c0_i32 = arith.constant 0 : i32
    %c0_i32_0 = arith.constant 0 : i32
    return %c0_i32, %arg0 : i32, i32
  }
}

</mosaic_0001>

<llo_original>
// kernel: dqnet_sparse_forward.1
$region0: #{dqnet_sparse_forward.1}
  #allocation0 [shape = 'u32[]', space=smem, size = 0x4, offset = 0x4, fixed_abs, tag = 'smem constant byte address 0x4 - core index']
  #allocation1 [shape = 'u32[144,128]{1,0:T(1,128)}', space=vmem, size = 0x12000, scoped, tag = 'internal scratch']
  #allocation2 [shape = 'f32[1]{0:T(128)S(6)}', space=smem, size = 0x200, scoped, tag = 'scoped memory for dqnet_sparse_forward.1']
  %s0 = inlined_call_operand.vmem [shape: f32[128,24], index: 0, kind: input, shape index: {}]
  %s1 = inlined_call_operand.vmem [shape: f32[1,24], index: 1, kind: input, shape index: {}]
  %s2 = inlined_call_operand.vmem [shape: f32[24,128], index: 2, kind: input, shape index: {}]
  %s3 = inlined_call_operand.vmem [shape: f32[1,128], index: 3, kind: input, shape index: {}]
  %s4 = inlined_call_operand.hbm [shape: f32[2,128,128], index: 4, kind: input, shape index: {}]
  %s5 = inlined_call_operand.vmem [shape: f32[2,1,128], index: 5, kind: input, shape index: {}]
  %s6 = inlined_call_operand.vmem [shape: f32[1,128], index: 6, kind: input, shape index: {}]
  %s7 = inlined_call_operand.<no memory space> [shape: f32[1], index: 7, kind: input, shape index: {}]
  %s8 = inlined_call_operand.vmem [shape: f32[1,128], index: 8, kind: output, shape index: {}]
  %s9 = sld [smem:[#allocation0]]
  $region46: #{dqnet_sparse_forward.1} parent=0
    _
  %s11 = ssub.s32 1, %s9
  %s12 = scalar_select 0, %s11, %s9
  %13 = sst [smem:[#allocation2]] %s7
  $region1: #{dqnet_sparse_forward.1} parent=0
    #allocation3 [shape = 'u8[131072]{0}', space=vmem, size = 0x20000, scoped, tag = 'input window, operand 4, single buffered']
    #allocation4 [shape = 's32[1]{0}', space=sflag, size = 0x4, scoped, tag = 'scoped memory for dqnet_sparse_forward.1']
    %14 = vsyncpa [#allocation4], 0
    // Predicated region
    $region2: #{dqnet_sparse_forward.1} parent=1 // pred_check
      _
    $region3: #{dqnet_sparse_forward.1} parent=1 // pred_check_branch
      %16 = sbr.rel (0) target = $region5
    $region4: #{dqnet_sparse_forward.1} parent=1 // pred_region
      _
    $region5: #{dqnet_sparse_forward.1} parent=1 // pred_fallthru
      _
    // Predicated region
    $region6: #{dqnet_sparse_forward.1} parent=1 // pred_check
      _
    $region7: #{dqnet_sparse_forward.1} parent=1 // pred_check_branch
      %18 = sbr.rel (0) target = $region9
    $region8: #{dqnet_sparse_forward.1} parent=1 // pred_region
      _
    $region9: #{dqnet_sparse_forward.1} parent=1 // pred_fallthru
      _
    // Predicated region
    $region10: #{dqnet_sparse_forward.1} parent=1 // pred_check
      _
    $region11: #{dqnet_sparse_forward.1} parent=1 // pred_check_branch
      %20 = sbr.rel (0) target = $region13
    $region12: #{dqnet_sparse_forward.1} parent=1 // pred_region
      _
    $region13: #{dqnet_sparse_forward.1} parent=1 // pred_fallthru
      _
    // Predicated region
    $region14: #{dqnet_sparse_forward.1} parent=1 // pred_check
      _
    $region15: #{dqnet_sparse_forward.1} parent=1 // pred_check_branch
      %22 = sbr.rel (0) target = $region17
    $region16: #{dqnet_sparse_forward.1} parent=1 // pred_region
      _
    $region17: #{dqnet_sparse_forward.1} parent=1 // pred_fallthru
      _
    // Predicated region
    $region18: #{dqnet_sparse_forward.1} parent=1 // pred_check
      _
    $region19: #{dqnet_sparse_forward.1} parent=1 // pred_check_branch
      %24 = sbr.rel (0) target = $region21
    $region20: #{dqnet_sparse_forward.1} parent=1 // pred_region
      %s26 = ssub.s32 4096, 4096
      %27 = vsyncadd [#allocation4], %s26
      %s28 = sshll.u32 [#allocation3], 4
      %s29 = int_to_ptr.vmem [resolvable:$true] %s28
      %34 = dma.hbm_to_vmem [thread:$0]  %s4, 4096, %s29, [#allocation4], 128, 128, 8
    $region21: #{dqnet_sparse_forward.1} parent=1 // pred_fallthru
      _
    // Predicated region
    $region22: #{dqnet_sparse_forward.1} parent=1 // pred_check
      _
    $region23: #{dqnet_sparse_forward.1} parent=1 // pred_check_branch
      %36 = sbr.rel (0) target = $region25
    $region24: #{dqnet_sparse_forward.1} parent=1 // pred_region
      _
    $region25: #{dqnet_sparse_forward.1} parent=1 // pred_fallthru
      _
    // Predicated region
    $region26: #{dqnet_sparse_forward.1} parent=1 // pred_check
      _
    $region27: #{dqnet_sparse_forward.1} parent=1 // pred_check_branch
      %38 = sbr.rel (0) target = $region29
    $region28: #{dqnet_sparse_forward.1} parent=1 // pred_region
      _
    $region29: #{dqnet_sparse_forward.1} parent=1 // pred_fallthru
      _
    // Predicated region
    $region30: #{dqnet_sparse_forward.1} parent=1 // pred_check
      _
    $region31: #{dqnet_sparse_forward.1} parent=1 // pred_check_branch
      %40 = sbr.rel (0) target = $region33
    $region32: #{dqnet_sparse_forward.1} parent=1 // pred_region
      _
    $region33: #{dqnet_sparse_forward.1} parent=1 // pred_fallthru
      _
    // Predicated region
    $region34: #{dqnet_sparse_forward.1} parent=1 // pred_check
      _
    $region35: #{dqnet_sparse_forward.1} parent=1 // pred_check_branch
      %42 = sbr.rel (0) target = $region37
    $region36: #{dqnet_sparse_forward.1} parent=1 // pred_region
      %43 = dma.done [#allocation4], 4096
    $region37: #{dqnet_sparse_forward.1} parent=1 // pred_fallthru
      _
    %v44 = vld [vmem:[%s0] sm:$0xff]
    %v45 = vld [vmem:[%s0 + $0x8] sm:$0xff]
    %v46 = vld [vmem:[%s0 + $0x10] sm:$0xff]
    %v47 = vld [vmem:[%s0 + $0x18] sm:$0xff]
    %v48 = vld [vmem:[%s0 + $0x20] sm:$0xff]
    %v49 = vld [vmem:[%s0 + $0x28] sm:$0xff]
    %v50 = vld [vmem:[%s0 + $0x30] sm:$0xff]
    %v51 = vld [vmem:[%s0 + $0x38] sm:$0xff]
    %v52 = vld [vmem:[%s0 + $0x40] sm:$0xff]
    %v53 = vld [vmem:[%s0 + $0x48] sm:$0xff]
    %v54 = vld [vmem:[%s0 + $0x50] sm:$0xff]
    %v55 = vld [vmem:[%s0 + $0x58] sm:$0xff]
    %v56 = vld [vmem:[%s0 + $0x60] sm:$0xff]
    %v57 = vld [vmem:[%s0 + $0x68] sm:$0xff]
    %v58 = vld [vmem:[%s0 + $0x70] sm:$0xff]
    %v59 = vld [vmem:[%s0 + $0x78] sm:$0xff]
    %v60 = vld [vmem:[%s1] sm:$0x1]
    %v61 = vld [vmem:[%s2] sm:$0xff]
    %v62 = vld [vmem:[%s2 + $0x8] sm:$0xff]
    %v63 = vld [vmem:[%s2 + $0x10] sm:$0xff]
    %v64 = vld [vmem:[%s3] sm:$0x1]
    %v66 = vlaneseq
    %v67 = vshrl.u32 %v66, 7
    %v68 = vsub.s32 0, %v67
    %v69 = vrot.slane %v64, %v68
    %vm71 = vcmask 195584
    %v73 = vsel %vm71, %v44, 0
    %v76 = vsel %vm71, %v45, 0
    %v79 = vsel %vm71, %v46, 0
    %v82 = vsel %vm71, %v47, 0
    %v85 = vsel %vm71, %v48, 0
    %v88 = vsel %vm71, %v49, 0
    %v91 = vsel %vm71, %v50, 0
    %v94 = vsel %vm71, %v51, 0
    %v97 = vsel %vm71, %v52, 0
    %v100 = vsel %vm71, %v53, 0
    %v103 = vsel %vm71, %v54, 0
    %v106 = vsel %vm71, %v55, 0
    %v109 = vsel %vm71, %v56, 0
    %v112 = vsel %vm71, %v57, 0
    %v115 = vsel %vm71, %v58, 0
    %v118 = vsel %vm71, %v59, 0
    %120 = vmatprep.subr.mxu0 0.0
    %121 = vmatpush1.msra.mxu0 %v61
    %122 = vmatprep.subr.mxu0 0.0
    %123 = vmatpush1.msra.mxu0 %v62
    %124 = vmatprep.subr.mxu0 0.0
    %125 = vmatpush1.msra.mxu0 %v63
    %126 = vmatprep.subr.mxu0 0.0
    %127 = vmatpush1.msra.mxu0 0.0
    %128 = vmatprep.subr.mxu0 0.0
    %129 = vmatpush1.msra.mxu0 0.0
    %130 = vmatprep.subr.mxu0 0.0
    %131 = vmatpush1.msra.mxu0 0.0
    %132 = vmatprep.subr.mxu0 0.0
    %133 = vmatpush1.msra.mxu0 0.0
    %134 = vmatprep.subr.mxu0 0.0
    %135 = vmatpush1.msra.mxu0 0.0
    %136 = vmatprep.subr.mxu0 0.0
    %137 = vmatpush1.msra.mxu0 0.0
    %138 = vmatprep.subr.mxu0 0.0
    %139 = vmatpush1.msra.mxu0 0.0
    %140 = vmatprep.subr.mxu0 0.0
    %141 = vmatpush1.msra.mxu0 0.0
    %142 = vmatprep.subr.mxu0 0.0
    %143 = vmatpush1.msra.mxu0 0.0
    %144 = vmatprep.subr.mxu0 0.0
    %145 = vmatpush1.msra.mxu0 0.0
    %146 = vmatprep.subr.mxu0 0.0
    %147 = vmatpush1.msra.mxu0 0.0
    %148 = vmatprep.subr.mxu0 0.0
    %149 = vmatpush1.msra.mxu0 0.0
    %150 = vmatprep.subr.mxu0 0.0
    %151 = vmatpush1.msra.mxu0 0.0
    %152 = vmatprep.subr.mxu0 0.0
    %153 = vmatpush1.msra.mxu0 0.0
    %154 = vmatprep.subr.mxu0 0.0
    %155 = vmatpush1.msra.mxu0 0.0
    %156 = vmatprep.subr.mxu0 0.0
    %157 = vmatpush1.msra.mxu0 0.0
    %158 = vmatprep.subr.mxu0 0.0
    %159 = vmatpush1.msra.mxu0 0.0
    %160 = vmatprep.subr.mxu0 0.0
    %161 = vmatpush1.msra.mxu0 0.0
    %162 = vmatprep.subr.mxu0 0.0
    %163 = vmatpush1.msra.mxu0 0.0
    %164 = vmatprep.subr.mxu0 0.0
    %165 = vmatpush1.msra.mxu0 0.0
    %166 = vmatprep.subr.mxu0 0.0
    %167 = vmatpush1.msra.mxu0 0.0
    %168 = vmatprep.subr.mxu0 0.0
    %169 = vmatpush1.msra.mxu0 0.0
    %170 = vmatprep.subr.mxu0 0.0
    %171 = vmatpush1.msra.mxu0 0.0
    %172 = vmatprep.subr.mxu0 0.0
    %173 = vmatpush1.msra.mxu0 0.0
    %174 = vmatprep.subr.mxu0 0.0
    %175 = vmatpush1.msra.mxu0 0.0
    %176 = vmatprep.subr.mxu0 0.0
    %177 = vmatpush1.msra.mxu0 0.0
    %178 = vmatprep.subr.mxu0 0.0
    %179 = vmatpush1.msra.mxu0 0.0
    %180 = vmatprep.subr.mxu0 0.0
    %181 = vmatpush1.msra.mxu0 0.0
    %182 = vmatprep.subr.mxu0 0.0
    %183 = vmatpush1.msra.mxu0 0.0
    %184 = vmatprep.mubr.f32.mxu0 0.0
    %185 = vmatmul.mubr.f32.gmra.mrb[0].mxu0 %v73
    %v186 = vpop.f32.mrb[0].mxu0
    %v187 = vadd.f32 %v69, %v186
    %v188 = vpop.f32.mrb[0].mxu0
    %189 = vmatprep.mubr.f32.mxu0 0.0
    %190 = vmatmul.mubr.f32.gmra.mrb[0].mxu0 %v76
    %v191 = vpop.f32.mrb[0].mxu0
    %v192 = vadd.f32 %v69, %v191
    %v193 = vpop.f32.mrb[0].mxu0
    %194 = vmatprep.mubr.f32.mxu0 0.0
    %195 = vmatmul.mubr.f32.gmra.mrb[0].mxu0 %v79
    %v196 = vpop.f32.mrb[0].mxu0
    %v197 = vadd.f32 %v69, %v196
    %v198 = vpop.f32.mrb[0].mxu0
    %199 = vmatprep.mubr.f32.mxu0 0.0
    %200 = vmatmul.mubr.f32.gmra.mrb[0].mxu0 %v82
    %v201 = vpop.f32.mrb[0].mxu0
    %v202 = vadd.f32 %v69, %v201
    %v203 = vpop.f32.mrb[0].mxu0
    %204 = vmatprep.mubr.f32.mxu0 0.0
    %205 = vmatmul.mubr.f32.gmra.mrb[0].mxu0 %v85
    %v206 = vpop.f32.mrb[0].mxu0
    %v207 = vadd.f32 %v69, %v206
    %v208 = vpop.f32.mrb[0].mxu0
    %209 = vmatprep.mubr.f32.mxu0 0.0
    %210 = vmatmul.mubr.f32.gmra.mrb[0].mxu0 %v88
    %v211 = vpop.f32.mrb[0].mxu0
    %v212 = vadd.f32 %v69, %v211
    %v213 = vpop.f32.mrb[0].mxu0
    %214 = vmatprep.mubr.f32.mxu0 0.0
    %215 = vmatmul.mubr.f32.gmra.mrb[0].mxu0 %v91
    %v216 = vpop.f32.mrb[0].mxu0
    %v217 = vadd.f32 %v69, %v216
    %v218 = vpop.f32.mrb[0].mxu0
    %219 = vmatprep.mubr.f32.mxu0 0.0
    %220 = vmatmul.mubr.f32.gmra.mrb[0].mxu0 %v94
    %v221 = vpop.f32.mrb[0].mxu0
    %v222 = vadd.f32 %v69, %v221
    %v223 = vpop.f32.mrb[0].mxu0
    %224 = vmatprep.mubr.f32.mxu0 0.0
    %225 = vmatmul.mubr.f32.gmra.mrb[0].mxu0 %v97
    %v226 = vpop.f32.mrb[0].mxu0
    %v227 = vadd.f32 %v69, %v226
    %v228 = vpop.f32.mrb[0].mxu0
    %229 = vmatprep.mubr.f32.mxu0 0.0
    %230 = vmatmul.mubr.f32.gmra.mrb[0].mxu0 %v100
    %v231 = vpop.f32.mrb[0].mxu0
    %v232 = vadd.f32 %v69, %v231
    %v233 = vpop.f32.mrb[0].mxu0
    %234 = vmatprep.mubr.f32.mxu0 0.0
    %235 = vmatmul.mubr.f32.gmra.mrb[0].mxu0 %v103
    %v236 = vpop.f32.mrb[0].mxu0
    %v237 = vadd.f32 %v69, %v236
    %v238 = vpop.f32.mrb[0].mxu0
    %239 = vmatprep.mubr.f32.mxu0 0.0
    %240 = vmatmul.mubr.f32.gmra.mrb[0].mxu0 %v106
    %v241 = vpop.f32.mrb[0].mxu0
    %v242 = vadd.f32 %v69, %v241
    %v243 = vpop.f32.mrb[0].mxu0
    %244 = vmatprep.mubr.f32.mxu0 0.0
    %245 = vmatmul.mubr.f32.gmra.mrb[0].mxu0 %v109
    %v246 = vpop.f32.mrb[0].mxu0
    %v247 = vadd.f32 %v69, %v246
    %v248 = vpop.f32.mrb[0].mxu0
    %249 = vmatprep.mubr.f32.mxu0 0.0
    %250 = vmatmul.mubr.f32.gmra.mrb[0].mxu0 %v112
    %v251 = vpop.f32.mrb[0].mxu0
    %v252 = vadd.f32 %v69, %v251
    %v253 = vpop.f32.mrb[0].mxu0
    %254 = vmatprep.mubr.f32.mxu0 0.0
    %255 = vmatmul.mubr.f32.gmra.mrb[0].mxu0 %v115
    %v256 = vpop.f32.mrb[0].mxu0
    %v257 = vadd.f32 %v69, %v256
    %v258 = vpop.f32.mrb[0].mxu0
    %259 = vmatprep.mubr.f32.mxu0 0.0
    %260 = vmatmul.mubr.f32.gmra.mrb[0].mxu0 %v118
    %v261 = vpop.f32.mrb[0].mxu0
    %v262 = vadd.f32 %v69, %v261
    %v263 = vpop.f32.mrb[0].mxu0
    %264 = vdwg.mxu0
    %v265 = vmax.f32 %v187, 0.0
    %v266 = vmax.f32 %v192, 0.0
    %v267 = vmax.f32 %v197, 0.0
    %v268 = vmax.f32 %v202, 0.0
    %v269 = vmax.f32 %v207, 0.0
    %v270 = vmax.f32 %v212, 0.0
    %v271 = vmax.f32 %v217, 0.0
    %v272 = vmax.f32 %v222, 0.0
    %v273 = vmax.f32 %v227, 0.0
    %v274 = vmax.f32 %v232, 0.0
    %v275 = vmax.f32 %v237, 0.0
    %v276 = vmax.f32 %v242, 0.0
    %v277 = vmax.f32 %v247, 0.0
    %v278 = vmax.f32 %v252, 0.0
    %v279 = vmax.f32 %v257, 0.0
    %v280 = vmax.f32 %v262, 0.0
    %v281 = vld [vmem:[#allocation3] sm:$0xff]
    %v282 = vld [vmem:[#allocation3 + $0x8] sm:$0xff]
    %v283 = vld [vmem:[#allocation3 + $0x10] sm:$0xff]
    %v284 = vld [vmem:[#allocation3 + $0x18] sm:$0xff]
    %v285 = vld [vmem:[#allocation3 + $0x20] sm:$0xff]
    %v286 = vld [vmem:[#allocation3 + $0x28] sm:$0xff]
    %v287 = vld [vmem:[#allocation3 + $0x30] sm:$0xff]
    %v288 = vld [vmem:[#allocation3 + $0x38] sm:$0xff]
    %v289 = vld [vmem:[#allocation3 + $0x40] sm:$0xff]
    %v290 = vld [vmem:[#allocation3 + $0x48] sm:$0xff]
    %v291 = vld [vmem:[#allocation3 + $0x50] sm:$0xff]
    %v292 = vld [vmem:[#allocation3 + $0x58] sm:$0xff]
    %v293 = vld [vmem:[#allocation3 + $0x60] sm:$0xff]
    %v294 = vld [vmem:[#allocation3 + $0x68] sm:$0xff]
    %v295 = vld [vmem:[#allocation3 + $0x70] sm:$0xff]
    %v296 = vld [vmem:[#allocation3 + $0x78] sm:$0xff]
    %v297 = vld [vmem:[%s5] sm:$0x1]
    %v299 = vlaneseq
    %v300 = vshrl.u32 %v299, 7
    %v301 = vsub.s32 0, %v300
    %v302 = vrot.slane %v297, %v301
    %304 = vmatprep.subr.mxu0 0.0
    %305 = vmatpush1.msra.mxu0 %v281
    %306 = vmatprep.subr.mxu0 0.0
    %307 = vmatpush1.msra.mxu0 %v282
    %308 = vmatprep.subr.mxu0 0.0
    %309 = vmatpush1.msra.mxu0 %v283
    %310 = vmatprep.subr.mxu0 0.0
    %311 = vmatpush1.msra.mxu0 %v284
    %312 = vmatprep.subr.mxu0 0.0
    %313 = vmatpush1.msra.mxu0 %v285
    %314 = vmatprep.subr.mxu0 0.0
    %315 = vmatpush1.msra.mxu0 %v286
    %316 = vmatprep.subr.mxu0 0.0
    %317 = vmatpush1.msra.mxu0 %v287
    %318 = vmatprep.subr.mxu0 0.0
    %319 = vmatpush1.msra.mxu0 %v288
    %320 = vmatprep.subr.mxu0 0.0
    %321 = vmatpush1.msra.mxu0 %v289
    %322 = vmatprep.subr.mxu0 0.0
    %323 = vmatpush1.msra.mxu0 %v290
    %324 = vmatprep.subr.mxu0 0.0
    %325 = vmatpush1.msra.mxu0 %v291
    %326 = vmatprep.subr.mxu0 0.0
    %327 = vmatpush1.msra.mxu0 %v292
    %328 = vmatprep.subr.mxu0 0.0
    %329 = vmatpush1.msra.mxu0 %v293
    %330 = vmatprep.subr.mxu0 0.0
    %331 = vmatpush1.msra.mxu0 %v294
    %332 = vmatprep.subr.mxu0 0.0
    %333 = vmatpush1.msra.mxu0 %v295
    %334 = vmatprep.subr.mxu0 0.0
    %335 = vmatpush1.msra.mxu0 %v296
    %336 = vmatprep.subr.mxu0 0.0
    %337 = vmatpush1.msra.mxu0 0.0
    %338 = vmatprep.subr.mxu0 0.0
    %339 = vmatpush1.msra.mxu0 0.0
    %340 = vmatprep.subr.mxu0 0.0
    %341 = vmatpush1.msra.mxu0 0.0
    %342 = vmatprep.subr.mxu0 0.0
    %343 = vmatpush1.msra.mxu0 0.0
    %344 = vmatprep.subr.mxu0 0.0
    %345 = vmatpush1.msra.mxu0 0.0
    %346 = vmatprep.subr.mxu0 0.0
    %347 = vmatpush1.msra.mxu0 0.0
    %348 = vmatprep.subr.mxu0 0.0
    %349 = vmatpush1.msra.mxu0 0.0
    %350 = vmatprep.subr.mxu0 0.0
    %351 = vmatpush1.msra.mxu0 0.0
    %352 = vmatprep.subr.mxu0 0.0
    %353 = vmatpush1.msra.mxu0 0.0
    %354 = vmatprep.subr.mxu0 0.0
    %355 = vmatpush1.msra.mxu0 0.0
    %356 = vmatprep.subr.mxu0 0.0
    %357 = vmatpush1.msra.mxu0 0.0
    %358 = vmatprep.subr.mxu0 0.0
    %359 = vmatpush1.msra.mxu0 0.0
    %360 = vmatprep.subr.mxu0 0.0
    %361 = vmatpush1.msra.mxu0 0.0
    %362 = vmatprep.subr.mxu0 0.0
    %363 = vmatpush1.msra.mxu0 0.0
    %364 = vmatprep.subr.mxu0 0.0
    %365 = vmatpush1.msra.mxu0 0.0
    %366 = vmatprep.subr.mxu0 0.0
    %367 = vmatpush1.msra.mxu0 0.0
    %368 = vmatprep.mubr.f32.mxu0 0.0
    %369 = vmatmul.mubr.f32.gmra.mrb[0].mxu0 %v265
    %v370 = vpop.f32.mrb[0].mxu0
    %v371 = vadd.f32 %v302, %v370
    %v372 = vpop.f32.mrb[0].mxu0
    %373 = vmatprep.mubr.f32.mxu0 0.0
    %374 = vmatmul.mubr.f32.gmra.mrb[0].mxu0 %v266
    %v375 = vpop.f32.mrb[0].mxu0
    %v376 = vadd.f32 %v302, %v375
    %v377 = vpop.f32.mrb[0].mxu0
    %378 = vmatprep.mubr.f32.mxu0 0.0
    %379 = vmatmul.mubr.f32.gmra.mrb[0].mxu0 %v267
    %v380 = vpop.f32.mrb[0].mxu0
    %v381 = vadd.f32 %v302, %v380
    %v382 = vpop.f32.mrb[0].mxu0
    %383 = vmatprep.mubr.f32.mxu0 0.0
    %384 = vmatmul.mubr.f32.gmra.mrb[0].mxu0 %v268
    %v385 = vpop.f32.mrb[0].mxu0
    %v386 = vadd.f32 %v302, %v385
    %v387 = vpop.f32.mrb[0].mxu0
    %388 = vmatprep.mubr.f32.mxu0 0.0
    %389 = vmatmul.mubr.f32.gmra.mrb[0].mxu0 %v269
    %v390 = vpop.f32.mrb[0].mxu0
    %v391 = vadd.f32 %v302, %v390
    %v392 = vpop.f32.mrb[0].mxu0
    %393 = vmatprep.mubr.f32.mxu0 0.0
    %394 = vmatmul.mubr.f32.gmra.mrb[0].mxu0 %v270
    %v395 = vpop.f32.mrb[0].mxu0
    %v396 = vadd.f32 %v302, %v395
    %v397 = vpop.f32.mrb[0].mxu0
    %398 = vmatprep.mubr.f32.mxu0 0.0
    %399 = vmatmul.mubr.f32.gmra.mrb[0].mxu0 %v271
    %v400 = vpop.f32.mrb[0].mxu0
    %v401 = vadd.f32 %v302, %v400
    %v402 = vpop.f32.mrb[0].mxu0
    %403 = vmatprep.mubr.f32.mxu0 0.0
    %404 = vmatmul.mubr.f32.gmra.mrb[0].mxu0 %v272
    %v405 = vpop.f32.mrb[0].mxu0
    %v406 = vadd.f32 %v302, %v405
    %v407 = vpop.f32.mrb[0].mxu0
    %408 = vmatprep.mubr.f32.mxu0 0.0
    %409 = vmatmul.mubr.f32.gmra.mrb[0].mxu0 %v273
    %v410 = vpop.f32.mrb[0].mxu0
    %v411 = vadd.f32 %v302, %v410
    %v412 = vpop.f32.mrb[0].mxu0
    %413 = vmatprep.mubr.f32.mxu0 0.0
    %414 = vmatmul.mubr.f32.gmra.mrb[0].mxu0 %v274
    %v415 = vpop.f32.mrb[0].mxu0
    %v416 = vadd.f32 %v302, %v415
    %v417 = vpop.f32.mrb[0].mxu0
    %418 = vmatprep.mubr.f32.mxu0 0.0
    %419 = vmatmul.mubr.f32.gmra.mrb[0].mxu0 %v275
    %v420 = vpop.f32.mrb[0].mxu0
    %v421 = vadd.f32 %v302, %v420
    %v422 = vpop.f32.mrb[0].mxu0
    %423 = vmatprep.mubr.f32.mxu0 0.0
    %424 = vmatmul.mubr.f32.gmra.mrb[0].mxu0 %v276
    %v425 = vpop.f32.mrb[0].mxu0
    %v426 = vadd.f32 %v302, %v425
    %v427 = vpop.f32.mrb[0].mxu0
    %428 = vmatprep.mubr.f32.mxu0 0.0
    %429 = vmatmul.mubr.f32.gmra.mrb[0].mxu0 %v277
    %v430 = vpop.f32.mrb[0].mxu0
    %v431 = vadd.f32 %v302, %v430
    %v432 = vpop.f32.mrb[0].mxu0
    %433 = vmatprep.mubr.f32.mxu0 0.0
    %434 = vmatmul.mubr.f32.gmra.mrb[0].mxu0 %v278
    %v435 = vpop.f32.mrb[0].mxu0
    %v436 = vadd.f32 %v302, %v435
    %v437 = vpop.f32.mrb[0].mxu0
    %438 = vmatprep.mubr.f32.mxu0 0.0
    %439 = vmatmul.mubr.f32.gmra.mrb[0].mxu0 %v279
    %v440 = vpop.f32.mrb[0].mxu0
    %v441 = vadd.f32 %v302, %v440
    %v442 = vpop.f32.mrb[0].mxu0
    %443 = vmatprep.mubr.f32.mxu0 0.0
    %444 = vmatmul.mubr.f32.gmra.mrb[0].mxu0 %v280
    %v445 = vpop.f32.mrb[0].mxu0
    %v446 = vadd.f32 %v302, %v445
    %v447 = vpop.f32.mrb[0].mxu0
    %448 = vdwg.mxu0
    %v449 = vmax.f32 %v371, 0.0
    %v450 = vmax.f32 %v376, 0.0
    %v451 = vmax.f32 %v381, 0.0
    %v452 = vmax.f32 %v386, 0.0
    %v453 = vmax.f32 %v391, 0.0
    %v454 = vmax.f32 %v396, 0.0
    %v455 = vmax.f32 %v401, 0.0
    %v456 = vmax.f32 %v406, 0.0
    %v457 = vmax.f32 %v411, 0.0
    %v458 = vmax.f32 %v416, 0.0
    %v459 = vmax.f32 %v421, 0.0
    %v460 = vmax.f32 %v426, 0.0
    %v461 = vmax.f32 %v431, 0.0
    %v462 = vmax.f32 %v436, 0.0
    %v463 = vmax.f32 %v441, 0.0
    %v464 = vmax.f32 %v446, 0.0
    %s465 = scalar_lea.vmem [#allocation3], 128
    %v466 = vld [vmem:[%s465] sm:$0xff]
    %v467 = vld [vmem:[%s465 + $0x8] sm:$0xff]
    %v468 = vld [vmem:[%s465 + $0x10] sm:$0xff]
    %v469 = vld [vmem:[%s465 + $0x18] sm:$0xff]
    %v470 = vld [vmem:[%s465 + $0x20] sm:$0xff]
    %v471 = vld [vmem:[%s465 + $0x28] sm:$0xff]
    %v472 = vld [vmem:[%s465 + $0x30] sm:$0xff]
    %v473 = vld [vmem:[%s465 + $0x38] sm:$0xff]
    %v474 = vld [vmem:[%s465 + $0x40] sm:$0xff]
    %v475 = vld [vmem:[%s465 + $0x48] sm:$0xff]
    %v476 = vld [vmem:[%s465 + $0x50] sm:$0xff]
    %v477 = vld [vmem:[%s465 + $0x58] sm:$0xff]
    %v478 = vld [vmem:[%s465 + $0x60] sm:$0xff]
    %v479 = vld [vmem:[%s465 + $0x68] sm:$0xff]
    %v480 = vld [vmem:[%s465 + $0x70] sm:$0xff]
    %v481 = vld [vmem:[%s465 + $0x78] sm:$0xff]
    %s482 = scalar_lea.vmem %s5, 1
    %v483 = vld [vmem:[%s482] sm:$0x1]
    %v485 = vlaneseq
    %v486 = vshrl.u32 %v485, 7
    %v487 = vsub.s32 0, %v486
    %v488 = vrot.slane %v483, %v487
    %490 = vmatprep.subr.mxu0 0.0
    %491 = vmatpush1.msra.mxu0 %v466
    %492 = vmatprep.subr.mxu0 0.0
    %493 = vmatpush1.msra.mxu0 %v467
    %494 = vmatprep.subr.mxu0 0.0
    %495 = vmatpush1.msra.mxu0 %v468
    %496 = vmatprep.subr.mxu0 0.0
    %497 = vmatpush1.msra.mxu0 %v469
    %498 = vmatprep.subr.mxu0 0.0
    %499 = vmatpush1.msra.mxu0 %v470
    %500 = vmatprep.subr.mxu0 0.0
    %501 = vmatpush1.msra.mxu0 %v471
    %502 = vmatprep.subr.mxu0 0.0
    %503 = vmatpush1.msra.mxu0 %v472
    %504 = vmatprep.subr.mxu0 0.0
    %505 = vmatpush1.msra.mxu0 %v473
    %506 = vmatprep.subr.mxu0 0.0
    %507 = vmatpush1.msra.mxu0 %v474
    %508 = vmatprep.subr.mxu0 0.0
    %509 = vmatpush1.msra.mxu0 %v475
    %510 = vmatprep.subr.mxu0 0.0
    %511 = vmatpush1.msra.mxu0 %v476
    %512 = vmatprep.subr.mxu0 0.0
    %513 = vmatpush1.msra.mxu0 %v477
    %514 = vmatprep.subr.mxu0 0.0
    %515 = vmatpush1.msra.mxu0 %v478
    %516 = vmatprep.subr.mxu0 0.0
    %517 = vmatpush1.msra.mxu0 %v479
    %518 = vmatprep.subr.mxu0 0.0
    %519 = vmatpush1.msra.mxu0 %v480
    %520 = vmatprep.subr.mxu0 0.0
    %521 = vmatpush1.msra.mxu0 %v481
    %522 = vmatprep.subr.mxu0 0.0
    %523 = vmatpush1.msra.mxu0 0.0
    %524 = vmatprep.subr.mxu0 0.0
    %525 = vmatpush1.msra.mxu0 0.0
    %526 = vmatprep.subr.mxu0 0.0
    %527 = vmatpush1.msra.mxu0 0.0
    %528 = vmatprep.subr.mxu0 0.0
    %529 = vmatpush1.msra.mxu0 0.0
    %530 = vmatprep.subr.mxu0 0.0
    %531 = vmatpush1.msra.mxu0 0.0
    %532 = vmatprep.subr.mxu0 0.0
    %533 = vmatpush1.msra.mxu0 0.0
    %534 = vmatprep.subr.mxu0 0.0
    %535 = vmatpush1.msra.mxu0 0.0
    %536 = vmatprep.subr.mxu0 0.0
    %537 = vmatpush1.msra.mxu0 0.0
    %538 = vmatprep.subr.mxu0 0.0
    %539 = vmatpush1.msra.mxu0 0.0
    %540 = vmatprep.subr.mxu0 0.0
    %541 = vmatpush1.msra.mxu0 0.0
    %542 = vmatprep.subr.mxu0 0.0
    %543 = vmatpush1.msra.mxu0 0.0
    %544 = vmatprep.subr.mxu0 0.0
    %545 = vmatpush1.msra.mxu0 0.0
    %546 = vmatprep.subr.mxu0 0.0
    %547 = vmatpush1.msra.mxu0 0.0
    %548 = vmatprep.subr.mxu0 0.0
    %549 = vmatpush1.msra.mxu0 0.0
    %550 = vmatprep.subr.mxu0 0.0
    %551 = vmatpush1.msra.mxu0 0.0
    %552 = vmatprep.subr.mxu0 0.0
    %553 = vmatpush1.msra.mxu0 0.0
    %554 = vmatprep.mubr.f32.mxu0 0.0
    %555 = vmatmul.mubr.f32.gmra.mrb[0].mxu0 %v449
    %v556 = vpop.f32.mrb[0].mxu0
    %v557 = vadd.f32 %v488, %v556
    %v558 = vpop.f32.mrb[0].mxu0
    %559 = vmatprep.mubr.f32.mxu0 0.0
    %560 = vmatmul.mubr.f32.gmra.mrb[0].mxu0 %v450
    %v561 = vpop.f32.mrb[0].mxu0
    %v562 = vadd.f32 %v488, %v561
    %v563 = vpop.f32.mrb[0].mxu0
    %564 = vmatprep.mubr.f32.mxu0 0.0
    %565 = vmatmul.mubr.f32.gmra.mrb[0].mxu0 %v451
    %v566 = vpop.f32.mrb[0].mxu0
    %v567 = vadd.f32 %v488, %v566
    %v568 = vpop.f32.mrb[0].mxu0
    %569 = vmatprep.mubr.f32.mxu0 0.0
    %570 = vmatmul.mubr.f32.gmra.mrb[0].mxu0 %v452
    %v571 = vpop.f32.mrb[0].mxu0
    %v572 = vadd.f32 %v488, %v571
    %v573 = vpop.f32.mrb[0].mxu0
    %574 = vmatprep.mubr.f32.mxu0 0.0
    %575 = vmatmul.mubr.f32.gmra.mrb[0].mxu0 %v453
    %v576 = vpop.f32.mrb[0].mxu0
    %v577 = vadd.f32 %v488, %v576
    %v578 = vpop.f32.mrb[0].mxu0
    %579 = vmatprep.mubr.f32.mxu0 0.0
    %580 = vmatmul.mubr.f32.gmra.mrb[0].mxu0 %v454
    %v581 = vpop.f32.mrb[0].mxu0
    %v582 = vadd.f32 %v488, %v581
    %v583 = vpop.f32.mrb[0].mxu0
    %584 = vmatprep.mubr.f32.mxu0 0.0
    %585 = vmatmul.mubr.f32.gmra.mrb[0].mxu0 %v455
    %v586 = vpop.f32.mrb[0].mxu0
    %v587 = vadd.f32 %v488, %v586
    %v588 = vpop.f32.mrb[0].mxu0
    %589 = vmatprep.mubr.f32.mxu0 0.0
    %590 = vmatmul.mubr.f32.gmra.mrb[0].mxu0 %v456
    %v591 = vpop.f32.mrb[0].mxu0
    %v592 = vadd.f32 %v488, %v591
    %v593 = vpop.f32.mrb[0].mxu0
    %594 = vmatprep.mubr.f32.mxu0 0.0
    %595 = vmatmul.mubr.f32.gmra.mrb[0].mxu0 %v457
    %v596 = vpop.f32.mrb[0].mxu0
    %v597 = vadd.f32 %v488, %v596
    %v598 = vpop.f32.mrb[0].mxu0
    %599 = vmatprep.mubr.f32.mxu0 0.0
    %600 = vmatmul.mubr.f32.gmra.mrb[0].mxu0 %v458
    %v601 = vpop.f32.mrb[0].mxu0
    %v602 = vadd.f32 %v488, %v601
    %v603 = vpop.f32.mrb[0].mxu0
    %604 = vmatprep.mubr.f32.mxu0 0.0
    %605 = vmatmul.mubr.f32.gmra.mrb[0].mxu0 %v459
    %v606 = vpop.f32.mrb[0].mxu0
    %v607 = vadd.f32 %v488, %v606
    %v608 = vpop.f32.mrb[0].mxu0
    %609 = vmatprep.mubr.f32.mxu0 0.0
    %610 = vmatmul.mubr.f32.gmra.mrb[0].mxu0 %v460
    %v611 = vpop.f32.mrb[0].mxu0
    %v612 = vadd.f32 %v488, %v611
    %v613 = vpop.f32.mrb[0].mxu0
    %614 = vmatprep.mubr.f32.mxu0 0.0
    %615 = vmatmul.mubr.f32.gmra.mrb[0].mxu0 %v461
    %v616 = vpop.f32.mrb[0].mxu0
    %v617 = vadd.f32 %v488, %v616
    %v618 = vpop.f32.mrb[0].mxu0
    %619 = vmatprep.mubr.f32.mxu0 0.0
    %620 = vmatmul.mubr.f32.gmra.mrb[0].mxu0 %v462
    %v621 = vpop.f32.mrb[0].mxu0
    %v622 = vadd.f32 %v488, %v621
    %v623 = vpop.f32.mrb[0].mxu0
    %624 = vmatprep.mubr.f32.mxu0 0.0
    %625 = vmatmul.mubr.f32.gmra.mrb[0].mxu0 %v463
    %v626 = vpop.f32.mrb[0].mxu0
    %v627 = vadd.f32 %v488, %v626
    %v628 = vpop.f32.mrb[0].mxu0
    %629 = vmatprep.mubr.f32.mxu0 0.0
    %630 = vmatmul.mubr.f32.gmra.mrb[0].mxu0 %v464
    %v631 = vpop.f32.mrb[0].mxu0
    %v632 = vadd.f32 %v488, %v631
    %v633 = vpop.f32.mrb[0].mxu0
    %634 = vdwg.mxu0
    %v635 = vmax.f32 %v557, 0.0
    %v636 = vmax.f32 %v562, 0.0
    %v637 = vmax.f32 %v567, 0.0
    %v638 = vmax.f32 %v572, 0.0
    %v639 = vmax.f32 %v577, 0.0
    %v640 = vmax.f32 %v582, 0.0
    %v641 = vmax.f32 %v587, 0.0
    %v642 = vmax.f32 %v592, 0.0
    %v643 = vmax.f32 %v597, 0.0
    %v644 = vmax.f32 %v602, 0.0
    %v645 = vmax.f32 %v607, 0.0
    %v646 = vmax.f32 %v612, 0.0
    %v647 = vmax.f32 %v617, 0.0
    %v648 = vmax.f32 %v622, 0.0
    %v649 = vmax.f32 %v627, 0.0
    %v650 = vmax.f32 %v632, 0.0
    %v651 = vld [vmem:[%s6] sm:$0x1]
    %652 = vmatprep.subr.mxu0 0.0
    %653 = vmatpush1.xpose.msra.mxu0 %v635
    %654 = vmatprep.subr.mxu0 0.0
    %655 = vmatpush1.xpose.msra.mxu0 %v636
    %656 = vmatprep.subr.mxu0 0.0
    %657 = vmatpush1.xpose.msra.mxu0 %v637
    %658 = vmatprep.subr.mxu0 0.0
    %659 = vmatpush1.xpose.msra.mxu0 %v638
    %660 = vmatprep.subr.mxu0 0.0
    %661 = vmatpush1.xpose.msra.mxu0 %v639
    %662 = vmatprep.subr.mxu0 0.0
    %663 = vmatpush1.xpose.msra.mxu0 %v640
    %664 = vmatprep.subr.mxu0 0.0
    %665 = vmatpush1.xpose.msra.mxu0 %v641
    %666 = vmatprep.subr.mxu0 0.0
    %667 = vmatpush1.xpose.msra.mxu0 %v642
    %668 = vmatprep.subr.mxu0 0.0
    %669 = vmatpush1.xpose.msra.mxu0 %v643
    %670 = vmatprep.subr.mxu0 0.0
    %671 = vmatpush1.xpose.msra.mxu0 %v644
    %672 = vmatprep.subr.mxu0 0.0
    %673 = vmatpush1.xpose.msra.mxu0 %v645
    %674 = vmatprep.subr.mxu0 0.0
    %675 = vmatpush1.xpose.msra.mxu0 %v646
    %676 = vmatprep.subr.mxu0 0.0
    %677 = vmatpush1.xpose.msra.mxu0 %v647
    %678 = vmatprep.subr.mxu0 0.0
    %679 = vmatpush1.xpose.msra.mxu0 %v648
    %680 = vmatprep.subr.mxu0 0.0
    %681 = vmatpush1.xpose.msra.mxu0 %v649
    %682 = vmatprep.subr.mxu0 0.0
    %683 = vmatpush1.xpose.msra.mxu0 %v650
    %684 = vmatprep.subr.mxu0 0.0
    %685 = vmatpush1.xpose.msra.mxu0 0.0
    %686 = vmatprep.subr.mxu0 0.0
    %687 = vmatpush1.xpose.msra.mxu0 0.0
    %688 = vmatprep.subr.mxu0 0.0
    %689 = vmatpush1.xpose.msra.mxu0 0.0
    %690 = vmatprep.subr.mxu0 0.0
    %691 = vmatpush1.xpose.msra.mxu0 0.0
    %692 = vmatprep.subr.mxu0 0.0
    %693 = vmatpush1.xpose.msra.mxu0 0.0
    %694 = vmatprep.subr.mxu0 0.0
    %695 = vmatpush1.xpose.msra.mxu0 0.0
    %696 = vmatprep.subr.mxu0 0.0
    %697 = vmatpush1.xpose.msra.mxu0 0.0
    %698 = vmatprep.subr.mxu0 0.0
    %699 = vmatpush1.xpose.msra.mxu0 0.0
    %700 = vmatprep.subr.mxu0 0.0
    %701 = vmatpush1.xpose.msra.mxu0 0.0
    %702 = vmatprep.subr.mxu0 0.0
    %703 = vmatpush1.xpose.msra.mxu0 0.0
    %704 = vmatprep.subr.mxu0 0.0
    %705 = vmatpush1.xpose.msra.mxu0 0.0
    %706 = vmatprep.subr.mxu0 0.0
    %707 = vmatpush1.xpose.msra.mxu0 0.0
    %708 = vmatprep.subr.mxu0 0.0
    %709 = vmatpush1.xpose.msra.mxu0 0.0
    %710 = vmatprep.subr.mxu0 0.0
    %711 = vmatpush1.xpose.msra.mxu0 0.0
    %712 = vmatprep.subr.mxu0 0.0
    %713 = vmatpush1.xpose.msra.mxu0 0.0
    %714 = vmatprep.subr.mxu0 0.0
    %715 = vmatpush1.xpose.msra.mxu0 0.0
    %716 = vmatprep.mubr.f32.mxu0 0.0
    %717 = vmatmul.mubr.f32.gmra.mrb[0].mxu0 %v651
    %v718 = vpop.f32.mrb[0].mxu0
    %v719 = vadd.f32 0.0, %v718
    %v720 = vpop.f32.mrb[0].mxu0
    %721 = vdwg.mxu0
    %v723 = vsel %vm71, %v60, 0
    %725 = vmatprep.subr.mxu0 0.0
    %726 = vmatpush1.xpose.msra.mxu0 %v73
    %727 = vmatprep.subr.mxu0 0.0
    %728 = vmatpush1.xpose.msra.mxu0 %v76
    %729 = vmatprep.subr.mxu0 0.0
    %730 = vmatpush1.xpose.msra.mxu0 %v79
    %731 = vmatprep.subr.mxu0 0.0
    %732 = vmatpush1.xpose.msra.mxu0 %v82
    %733 = vmatprep.subr.mxu0 0.0
    %734 = vmatpush1.xpose.msra.mxu0 %v85
    %735 = vmatprep.subr.mxu0 0.0
    %736 = vmatpush1.xpose.msra.mxu0 %v88
    %737 = vmatprep.subr.mxu0 0.0
    %738 = vmatpush1.xpose.msra.mxu0 %v91
    %739 = vmatprep.subr.mxu0 0.0
    %740 = vmatpush1.xpose.msra.mxu0 %v94
    %741 = vmatprep.subr.mxu0 0.0
    %742 = vmatpush1.xpose.msra.mxu0 %v97
    %743 = vmatprep.subr.mxu0 0.0
    %744 = vmatpush1.xpose.msra.mxu0 %v100
    %745 = vmatprep.subr.mxu0 0.0
    %746 = vmatpush1.xpose.msra.mxu0 %v103
    %747 = vmatprep.subr.mxu0 0.0
    %748 = vmatpush1.xpose.msra.mxu0 %v106
    %749 = vmatprep.subr.mxu0 0.0
    %750 = vmatpush1.xpose.msra.mxu0 %v109
    %751 = vmatprep.subr.mxu0 0.0
    %752 = vmatpush1.xpose.msra.mxu0 %v112
    %753 = vmatprep.subr.mxu0 0.0
    %754 = vmatpush1.xpose.msra.mxu0 %v115
    %755 = vmatprep.subr.mxu0 0.0
    %756 = vmatpush1.xpose.msra.mxu0 %v118
    %757 = vmatprep.subr.mxu0 0.0
    %758 = vmatpush1.xpose.msra.mxu0 0.0
    %759 = vmatprep.subr.mxu0 0.0
    %760 = vmatpush1.xpose.msra.mxu0 0.0
    %761 = vmatprep.subr.mxu0 0.0
    %762 = vmatpush1.xpose.msra.mxu0 0.0
    %763 = vmatprep.subr.mxu0 0.0
    %764 = vmatpush1.xpose.msra.mxu0 0.0
    %765 = vmatprep.subr.mxu0 0.0
    %766 = vmatpush1.xpose.msra.mxu0 0.0
    %767 = vmatprep.subr.mxu0 0.0
    %768 = vmatpush1.xpose.msra.mxu0 0.0
    %769 = vmatprep.subr.mxu0 0.0
    %770 = vmatpush1.xpose.msra.mxu0 0.0
    %771 = vmatprep.subr.mxu0 0.0
    %772 = vmatpush1.xpose.msra.mxu0 0.0
    %773 = vmatprep.subr.mxu0 0.0
    %774 = vmatpush1.xpose.msra.mxu0 0.0
    %775 = vmatprep.subr.mxu0 0.0
    %776 = vmatpush1.xpose.msra.mxu0 0.0
    %777 = vmatprep.subr.mxu0 0.0
    %778 = vmatpush1.xpose.msra.mxu0 0.0
    %779 = vmatprep.subr.mxu0 0.0
    %780 = vmatpush1.xpose.msra.mxu0 0.0
    %781 = vmatprep.subr.mxu0 0.0
    %782 = vmatpush1.xpose.msra.mxu0 0.0
    %783 = vmatprep.subr.mxu0 0.0
    %784 = vmatpush1.xpose.msra.mxu0 0.0
    %785 = vmatprep.subr.mxu0 0.0
    %786 = vmatpush1.xpose.msra.mxu0 0.0
    %787 = vmatprep.subr.mxu0 0.0
    %788 = vmatpush1.xpose.msra.mxu0 0.0
    %789 = vmatprep.mubr.f32.mxu0 0.0
    %790 = vmatmul.mubr.f32.gmra.mrb[0].mxu0 %v723
    %v791 = vpop.f32.mrb[0].mxu0
    %v792 = vadd.f32 %v719, %v791
    %v793 = vpop.f32.mrb[0].mxu0
    %794 = vdwg.mxu0
    %s795 = sld [smem:[#allocation2]]
    %v796 = vstv %s795
    %v797 = vadd.f32 %v792, %v796
    %798 = vst [vmem:[%s8] sm:$0x1] %v797
    // Predicated region
    $region38: #{dqnet_sparse_forward.1} parent=1 // pred_check
      _
    $region39: #{dqnet_sparse_forward.1} parent=1 // pred_check_branch
      %800 = sbr.rel (0) target = $region41
    $region40: #{dqnet_sparse_forward.1} parent=1 // pred_region
      _
    $region41: #{dqnet_sparse_forward.1} parent=1 // pred_fallthru
      _
    // Predicated region
    $region42: #{dqnet_sparse_forward.1} parent=1 // pred_check
      _
    $region43: #{dqnet_sparse_forward.1} parent=1 // pred_check_branch
      %802 = sbr.rel (0) target = $region45
    $region44: #{dqnet_sparse_forward.1} parent=1 // pred_region
      _
    $region45: #{dqnet_sparse_forward.1} parent=1 // pred_fallthru
      _
    %803 = vsyncpa [#allocation4], 1

</llo_original>
